<compile_context>
chip_gen: v7x
topology: tpu7x:2x2x1
jax: 0.10.0
libtpu: 0.0.40
codegen_flags: <defaults>
</compile_context>

<pallas_src>
import functools

import jax
import jax.numpy as jnp
from jax.experimental import pallas as pl
from jax.experimental.pallas import tpu as pltpu


# --------------------------------------------------------------------------- #
# Kernels
# --------------------------------------------------------------------------- #
def ca_fused_kernel(x_ref, wv_ref, wq_ref, wl_ref, pk_ref, o_ref, *, c2, b_total):
    """Single-pass path: whole (Bt, C, HW) slab resident in VMEM."""
    bt = x_ref.shape[0]

    wv = wv_ref[...]                           # (C2, C)  f32
    wl = wl_ref[...]                           # (C,  C2) f32
    pk = pk_ref[...]                           # (C,  3)  f32: bv | gamma | beta
    bv = pk[:c2, 0:1]                          # (C2, 1)
    gamma = pk[:, 1:2]                         # (C, 1)
    beta = pk[:, 2:3]                          # (C, 1)
    # Cast the tiny wq row (not the slab) so bf16 inputs never upcast x.
    wq_x = wq_ref[...].astype(x_ref.dtype)     # (1, C)

    base = pl.program_id(0) * bt
    if b_total % bt == 0:
        num_valid = bt                          # static trip count
    else:
        num_valid = jnp.minimum(bt, b_total - base)  # ragged tail guard

    @pl.loop(0, num_valid)
    def _(b):
        xb = x_ref[b]                                                    # (C, HW)

        # Spatial softmax over wq logits (wq bias dropped: shift-invariant).
        logits = jnp.dot(wq_x, xb, preferred_element_type=jnp.float32)  # (1, HW)
        m = jnp.max(logits, axis=-1, keepdims=True)
        e = jnp.exp(logits - m)                                          # (1, HW)
        s = jnp.sum(e, axis=-1, keepdims=True)                           # (1, 1)

        # Associativity rewrite: pool x with the (unnormalized) softmax weights
        # first, then normalize the tiny pooled vector and run channel matmuls.
        xa = jax.lax.dot_general(xb, e.astype(xb.dtype),
                                 (((1,), (1,)), ((), ())),
                                 preferred_element_type=jnp.float32)     # (C, 1)
        xa = xa / s
        # +bv is exact because sum(softmax) == 1.
        mm = jnp.dot(wv, xa, preferred_element_type=jnp.float32) + bv    # (C2, 1)
        y = jnp.dot(wl, mm, preferred_element_type=jnp.float32)          # (C, 1)

        # LayerNorm([C,1,1]) over channels + affine + sigmoid.
        mean = jnp.mean(y, axis=0, keepdims=True)
        var = jnp.mean((y - mean) ** 2, axis=0, keepdims=True)
        ynorm = (y - mean) * jax.lax.rsqrt(var + 1e-5)
        scale = jax.nn.sigmoid(ynorm * gamma + beta)                     # (C, 1) f32

        # Broadcast the channel gate; cast the gate, not the slab.
        o_ref[b] = (xb * scale.astype(xb.dtype)).astype(o_ref.dtype)


def ca_stats_kernel(x_ref, wv_ref, wq_ref, wl_ref, pk_ref, s_ref,
                    m_sc, l_sc, acc_sc, *, c2, hw_valid):
    """Tiled-HW pass 1: online-softmax stats + weighted pooling, then the gate."""
    t = pl.program_id(1)
    tile_hw = x_ref.shape[2]

    pk = pk_ref[...]                           # (C, 3) f32
    wq_x = wq_ref[...].astype(x_ref.dtype)     # (1, C)

    @pl.when(t == 0)
    def _():
        m_sc[...] = jnp.full_like(m_sc, -jnp.inf)
        l_sc[...] = jnp.zeros_like(l_sc)
        acc_sc[...] = jnp.zeros_like(acc_sc)

    xb = x_ref[0]                                                        # (C, tile)
    logits = jnp.dot(wq_x, xb, preferred_element_type=jnp.float32)       # (1, tile)

    if hw_valid % tile_hw != 0:
        pos = t * tile_hw + jax.lax.broadcasted_iota(jnp.int32, (1, tile_hw), 1)
        valid = pos < hw_valid
        logits = jnp.where(valid, logits, -jnp.inf)
        xb_p = jnp.where(valid, xb, jnp.zeros_like(xb))
    else:
        xb_p = xb

    m_prev = m_sc[...]
    m_new = jnp.maximum(m_prev, jnp.max(logits, axis=-1, keepdims=True))
    a = jnp.exp(m_prev - m_new)
    p = jnp.exp(logits - m_new)                                          # (1, tile)
    l_sc[...] = a * l_sc[...] + jnp.sum(p, axis=-1, keepdims=True)
    contrib = jax.lax.dot_general(xb_p, p.astype(xb.dtype),
                                  (((1,), (1,)), ((), ())),
                                  preferred_element_type=jnp.float32)    # (C, 1)
    acc_sc[...] = a * acc_sc[...] + contrib
    m_sc[...] = m_new

    @pl.when(t == pl.num_programs(1) - 1)
    def _():
        bv = pk[:c2, 0:1]
        gamma = pk[:, 1:2]
        beta = pk[:, 2:3]
        xa = acc_sc[...] / l_sc[...]                                     # (C, 1)
        mm = jnp.dot(wv_ref[...], xa, preferred_element_type=jnp.float32) + bv
        y = jnp.dot(wl_ref[...], mm, preferred_element_type=jnp.float32)
        mean = jnp.mean(y, axis=0, keepdims=True)
        var = jnp.mean((y - mean) ** 2, axis=0, keepdims=True)
        ynorm = (y - mean) * jax.lax.rsqrt(var + 1e-5)
        s_ref[...] = jax.nn.sigmoid(ynorm * gamma + beta)[None]          # (1, C, 1)


def ca_apply_kernel(x_ref, s_ref, o_ref):
    """Tiled-HW pass 2: apply the per-channel gate."""
    o_ref[...] = (x_ref[...] * s_ref[...].astype(x_ref.dtype)).astype(o_ref.dtype)


# --------------------------------------------------------------------------- #
# Wrapper
# --------------------------------------------------------------------------- #
def _round_up(v, m):
    return (v + m - 1) // m * m


def _vmem_capacity_bytes():
    try:
        return int(pltpu.get_tpu_info().vmem_capacity_bytes)
    except Exception:
        return 64 << 20   # conservative default (v7x per-TensorCore VMEM)


def ca_forward(x, params):
    """x: (B, C, H, W) NCHW, matching the PyTorch module."""
    B, C, H, W = x.shape
    C2 = C // 2
    HW = H * W

    wv_w, wv_b, wq_w, wq_b, wl_w, ln_g, ln_b = params
    del wq_b  # softmax is shift-invariant -> the wq bias is a mathematical no-op

    # Flatten spatial dims (layout-compatible reshape, no HBM pass; no padding).
    xf = x.reshape(B, C, HW)

    itemsize = x.dtype.itemsize
    sub = max(8, 32 // itemsize)                 # sublane packing multiple
    C_pad = _round_up(C, sub)
    per_batch_vmem = C_pad * _round_up(HW, 128) * itemsize

    def _f32_blk(r, c):                          # padded, double-buffered f32 block
        return _round_up(r, 8) * _round_up(c, 128) * 4
    weight_vmem = 2 * (_f32_blk(C2, C) + _f32_blk(1, C) + _f32_blk(C, C2) + _f32_blk(C, 3))

    phys = _vmem_capacity_bytes()
    # Total budget for the double-buffered in+out x slabs (4 slab copies).
    slab_total = min(32 << 20, phys * 3 // 8)    # ~32 MiB on v5e/v6e, ~24 MiB on v7x
    slab_budget = slab_total // 4
    margin = 2 << 20

    # Pack the tiny per-channel params into one (C, 3) block: bv | gamma | beta.
    bv_col = jnp.zeros((C,), jnp.float32).at[:C2].set(wv_b.astype(jnp.float32))
    pk = jnp.stack([bv_col,
                    ln_g.reshape(C).astype(jnp.float32),
                    ln_b.reshape(C).astype(jnp.float32)], axis=1)        # (C, 3)
    wv_f = wv_w.astype(jnp.float32)
    wq_f = wq_w.reshape(1, C).astype(jnp.float32)
    wl_f = wl_w.astype(jnp.float32)

    # ---------------- single-pass fused path ---------------- #
    if 4 * per_batch_vmem + weight_vmem + margin <= max(phys - (16 << 20), 16 << 20):
        Bt = max(1, min(B, slab_budget // max(per_batch_vmem, 1)))
        if B >= 2:
            Bt = min(Bt, max(1, B // 2))   # >= 2 grid steps for 2-TC megacore (v7x)
        grid0 = pl.cdiv(B, Bt)

        vmem_needed = 4 * Bt * per_batch_vmem + weight_vmem + margin
        vmem_limit = int(min(max(vmem_needed, 16 << 20), phys - (4 << 20)))

        kernel = functools.partial(ca_fused_kernel, c2=C2, b_total=B)
        out = pl.pallas_call(
            kernel,
            out_shape=jax.ShapeDtypeStruct((B, C, HW), x.dtype),
            grid=(grid0,),
            in_specs=[
                pl.BlockSpec((Bt, C, HW), lambda i: (i, 0, 0)),   # x slab
                pl.BlockSpec((C2, C), lambda i: (0, 0)),          # wv weight
                pl.BlockSpec((1, C), lambda i: (0, 0)),           # wq weight
                pl.BlockSpec((C, C2), lambda i: (0, 0)),          # last-conv weight
                pl.BlockSpec((C, 3), lambda i: (0, 0)),           # packed bv|gamma|beta
            ],
            out_specs=pl.BlockSpec((Bt, C, HW), lambda i: (i, 0, 0)),
            compiler_params=pltpu.CompilerParams(
                dimension_semantics=("parallel",),
                vmem_limit_bytes=vmem_limit,
            ),
            # TODO(synk): pass input_output_aliases={0: 0} when the caller donates x.
        )(xf, wv_f, wq_f, wl_f, pk)
        return out.reshape(B, C, H, W)

    # ---------------- two-pass HW-tiled fallback (large images) ---------------- #
    tile_hw = (slab_budget // max(C_pad * itemsize, 1)) // 128 * 128
    tile_hw = max(128, tile_hw)
    if tile_hw >= HW:
        tile_hw = HW
    T = pl.cdiv(HW, tile_hw)
    per_tile_vmem = C_pad * tile_hw * itemsize

    stats_kernel = functools.partial(ca_stats_kernel, c2=C2, hw_valid=HW)
    v1 = int(min(max(2 * per_tile_vmem + weight_vmem + margin, 16 << 20), phys - (4 << 20)))
    scale = pl.pallas_call(
        stats_kernel,
        out_shape=jax.ShapeDtypeStruct((B, C, 1), jnp.float32),
        grid=(B, T),
        in_specs=[
            pl.BlockSpec((1, C, tile_hw), lambda b, t: (b, 0, t)),
            pl.BlockSpec((C2, C), lambda b, t: (0, 0)),
            pl.BlockSpec((1, C), lambda b, t: (0, 0)),
            pl.BlockSpec((C, C2), lambda b, t: (0, 0)),
            pl.BlockSpec((C, 3), lambda b, t: (0, 0)),
        ],
        out_specs=pl.BlockSpec((1, C, 1), lambda b, t: (b, 0, 0)),
        scratch_shapes=[
            pltpu.VMEM((1, 1), jnp.float32),   # running max
            pltpu.VMEM((1, 1), jnp.float32),   # running sum(exp)
            pltpu.VMEM((C, 1), jnp.float32),   # running pooled x
        ],
        compiler_params=pltpu.CompilerParams(
            dimension_semantics=("parallel", "arbitrary"),
            vmem_limit_bytes=v1,
        ),
    )(xf, wv_f, wq_f, wl_f, pk)

    v2 = int(min(max(4 * per_tile_vmem + margin, 16 << 20), phys - (4 << 20)))
    out = pl.pallas_call(
        ca_apply_kernel,
        out_shape=jax.ShapeDtypeStruct((B, C, HW), x.dtype),
        grid=(B, T),
        in_specs=[
            pl.BlockSpec((1, C, tile_hw), lambda b, t: (b, 0, t)),
            pl.BlockSpec((1, C, 1), lambda b, t: (b, 0, 0)),
        ],
        out_specs=pl.BlockSpec((1, C, tile_hw), lambda b, t: (b, 0, t)),
        compiler_params=pltpu.CompilerParams(
            dimension_semantics=("parallel", "parallel"),
            vmem_limit_bytes=v2,
        ),
    )(xf, scale)
    return out.reshape(B, C, H, W)


# --------------------------------------------------------------------------- #
# Pure-JAX reference (mirrors the PyTorch forward, keeps the wq bias)
# --------------------------------------------------------------------------- #
def ca_reference(x, params):
    wv, bv, wq, bq, wl, gamma, beta = params
    B, C, H, W = x.shape
    xf = x.reshape(B, C, H * W)
    wv_out = jnp.einsum("oc,bcs->bos", wv, xf) + bv[None, :, None]       # (B, C2, HW)
    wq_out = jnp.einsum("oc,bcs->bos", wq, xf) + bq[None, :, None]       # (B, 1, HW)
    attn = jax.nn.softmax(wq_out, axis=-1)
    mm = jnp.sum(wv_out * attn, axis=-1, keepdims=True)                  # (B, C2, 1)
    y = jnp.einsum("oc,bcs->bos", wl, mm)                                # (B, C, 1)
    mean = jnp.mean(y, axis=1, keepdims=True)
    var = jnp.mean((y - mean) ** 2, axis=1, keepdims=True)
    ynorm = (y - mean) / jnp.sqrt(var + 1e-5)
    scale = jax.nn.sigmoid(ynorm * gamma[None, :, None] + beta[None, :, None])
    return scale[..., None] * x


if __name__ == "__main__":
    B, C, H, W = 2, 4, 16, 16
    C2 = C // 2

    key = jax.random.PRNGKey(0)
    k_x, k_wv, k_bv, k_wq, k_bq, k_wl = jax.random.split(key, 6)

    x = jax.random.normal(k_x, (B, C, H, W), dtype=jnp.float32)

    # Conv2d(kernel_size=1) weights collapsed to 2-D matrices; biases as vectors.
    wv_w = jax.random.normal(k_wv, (C2, C), dtype=jnp.float32) * 0.2
    wv_b = jax.random.normal(k_bv, (C2,), dtype=jnp.float32) * 0.1
    wq_w = jax.random.normal(k_wq, (1, C), dtype=jnp.float32) * 0.2
    wq_b = jax.random.normal(k_bq, (1,), dtype=jnp.float32) * 0.1
    wl_w = jax.random.normal(k_wl, (C, C2), dtype=jnp.float32) * 0.2
    # LayerNorm([C,1,1]) default init: weight=1, bias=0
    ln_g = jnp.ones((C,), dtype=jnp.float32)
    ln_b = jnp.zeros((C,), dtype=jnp.float32)

    params = (wv_w, wv_b, wq_w, wq_b, wl_w, ln_g, ln_b)

    out = jax.block_until_ready(ca_forward(x, params))
    ref = ca_reference(x, params)

    assert out.shape == (B, C, H, W)
    assert jnp.allclose(out, ref, atol=1e-5, rtol=1e-5), "mismatch vs reference"

    print("KERNEL_OK")
</pallas_src>

<mosaic_0001>
module attributes {stable_mosaic.version = 11 : i64} {
  func.func @ca_fused_kernel(%arg0: i32, %arg1: memref<1x4x256xf32, #tpu.memory_space<vmem>>, %arg2: memref<2x4xf32, #tpu.memory_space<vmem>>, %arg3: memref<1x4xf32, #tpu.memory_space<vmem>>, %arg4: memref<4x2xf32, #tpu.memory_space<vmem>>, %arg5: memref<4x3xf32, #tpu.memory_space<vmem>>, %arg6: memref<1x4x256xf32, #tpu.memory_space<vmem>>) attributes {dimension_semantics = [#tpu.dimension_semantics<parallel>], iteration_bounds = array<i64: 2>, scalar_prefetch = 0 : i64, scratch_operands = 0 : i64, tpu.core_type = #tpu.core_type<tc>, window_params = [{transform_indices = @transform_0, window_bounds = array<i64: 1, 4, 256>}, {pipeline_mode = #tpu.pipeline_mode<synchronous>, transform_indices = @transform_1, window_bounds = array<i64: 2, 4>}, {pipeline_mode = #tpu.pipeline_mode<synchronous>, transform_indices = @transform_2, window_bounds = array<i64: 1, 4>}, {pipeline_mode = #tpu.pipeline_mode<synchronous>, transform_indices = @transform_3, window_bounds = array<i64: 4, 2>}, {pipeline_mode = #tpu.pipeline_mode<synchronous>, transform_indices = @transform_4, window_bounds = array<i64: 4, 3>}, {transform_indices = @transform_5, window_bounds = array<i64: 1, 4, 256>}]} {
    %c0 = arith.constant 0 : index
    %c0_0 = arith.constant 0 : index
    %0 = vector.load %arg2[%c0, %c0_0] : memref<2x4xf32, #tpu.memory_space<vmem>>, vector<2x4xf32>
    %c0_1 = arith.constant 0 : index
    %c0_2 = arith.constant 0 : index
    %1 = vector.load %arg4[%c0_1, %c0_2] : memref<4x2xf32, #tpu.memory_space<vmem>>, vector<4x2xf32>
    %c0_3 = arith.constant 0 : index
    %c0_4 = arith.constant 0 : index
    %2 = vector.load %arg5[%c0_3, %c0_4] : memref<4x3xf32, #tpu.memory_space<vmem>>, vector<4x3xf32>
    %3 = vector.extract_strided_slice %2 {offsets = [0, 0], sizes = [2, 1], strides = [1, 1]} : vector<4x3xf32> to vector<2x1xf32>
    %4 = vector.extract_strided_slice %2 {offsets = [0, 1], sizes = [4, 1], strides = [1, 1]} : vector<4x3xf32> to vector<4x1xf32>
    %5 = vector.extract_strided_slice %2 {offsets = [0, 2], sizes = [4, 1], strides = [1, 1]} : vector<4x3xf32> to vector<4x1xf32>
    %c0_5 = arith.constant 0 : index
    %c0_6 = arith.constant 0 : index
    %6 = vector.load %arg3[%c0_5, %c0_6] : memref<1x4xf32, #tpu.memory_space<vmem>>, vector<1x4xf32>
    %c0_i32 = arith.constant 0 : i32
    %c1_i32 = arith.constant 1 : i32
    %7 = arith.muli %c0_i32, %c1_i32 : i32
    %c0_i32_7 = arith.constant 0 : i32
    %8 = arith.addi %c0_i32_7, %7 : i32
    %9 = arith.index_cast %8 : i32 to index
    %c0_8 = arith.constant 0 : index
    %c0_9 = arith.constant 0 : index
    %10 = vector.load %arg1[%9, %c0_8, %c0_9] : memref<1x4x256xf32, #tpu.memory_space<vmem>>, vector<1x4x256xf32>
    %11 = vector.shape_cast %10 : vector<1x4x256xf32> to vector<4x256xf32>
    %cst = arith.constant dense<0.000000e+00> : vector<1x256xf32>
    %12 = tpu.matmul %6, %11, %cst {dimension_numbers = #tpu.dot_dimension_numbers<[1], [0], [0], [1], [0, 0, 1, 1], [], []>} : vector<1x4xf32>, vector<4x256xf32>, vector<1x256xf32> -> vector<1x256xf32>
    %cst_10 = arith.constant dense<0xFF800000> : vector<1xf32>
    %13 = vector.multi_reduction <maximumf>, %12, %cst_10 [1] : vector<1x256xf32> to vector<1xf32>
    %14 = vector.shape_cast %13 : vector<1xf32> to vector<1x1xf32>
    %15 = vector.broadcast %14 : vector<1x1xf32> to vector<1x256xf32>
    %16 = arith.subf %12, %15 : vector<1x256xf32>
    %17 = math.exp %16 : vector<1x256xf32>
    %cst_11 = arith.constant dense<0.000000e+00> : vector<1xf32>
    %18 = vector.multi_reduction <add>, %17, %cst_11 [1] : vector<1x256xf32> to vector<1xf32>
    %19 = vector.shape_cast %18 : vector<1xf32> to vector<1x1xf32>
    %cst_12 = arith.constant dense<0.000000e+00> : vector<4x1xf32>
    %20 = tpu.matmul %11, %17, %cst_12 {dimension_numbers = #tpu.dot_dimension_numbers<[1], [1], [0], [0], [0, 0, 1, 0], [], []>} : vector<4x256xf32>, vector<1x256xf32>, vector<4x1xf32> -> vector<4x1xf32>
    %21 = vector.broadcast %19 : vector<1x1xf32> to vector<4x1xf32>
    %22 = arith.divf %20, %21 : vector<4x1xf32>
    %cst_13 = arith.constant dense<0.000000e+00> : vector<2x1xf32>
    %23 = tpu.matmul %0, %22, %cst_13 {dimension_numbers = #tpu.dot_dimension_numbers<[1], [0], [0], [1], [0, 0, 1, 1], [], []>} : vector<2x4xf32>, vector<4x1xf32>, vector<2x1xf32> -> vector<2x1xf32>
    %24 = arith.addf %23, %3 : vector<2x1xf32>
    %cst_14 = arith.constant dense<0.000000e+00> : vector<4x1xf32>
    %25 = tpu.matmul %1, %24, %cst_14 {dimension_numbers = #tpu.dot_dimension_numbers<[1], [0], [0], [1], [0, 0, 1, 1], [], []>} : vector<4x2xf32>, vector<2x1xf32>, vector<4x1xf32> -> vector<4x1xf32>
    %cst_15 = arith.constant dense<0.000000e+00> : vector<1xf32>
    %26 = vector.multi_reduction <add>, %25, %cst_15 [0] : vector<4x1xf32> to vector<1xf32>
    %27 = vector.shape_cast %26 : vector<1xf32> to vector<1x1xf32>
    %cst_16 = arith.constant 4.000000e+00 : f32
    %28 = vector.broadcast %cst_16 : f32 to vector<1x1xf32>
    %29 = arith.divf %27, %28 : vector<1x1xf32>
    %30 = vector.broadcast %29 : vector<1x1xf32> to vector<4x1xf32>
    %31 = arith.subf %25, %30 : vector<4x1xf32>
    %32 = arith.mulf %31, %31 : vector<4x1xf32>
    %cst_17 = arith.constant dense<0.000000e+00> : vector<1xf32>
    %33 = vector.multi_reduction <add>, %32, %cst_17 [0] : vector<4x1xf32> to vector<1xf32>
    %34 = vector.shape_cast %33 : vector<1xf32> to vector<1x1xf32>
    %cst_18 = arith.constant 4.000000e+00 : f32
    %35 = vector.broadcast %cst_18 : f32 to vector<1x1xf32>
    %36 = arith.divf %34, %35 : vector<1x1xf32>
    %37 = vector.broadcast %29 : vector<1x1xf32> to vector<4x1xf32>
    %38 = arith.subf %25, %37 : vector<4x1xf32>
    %cst_19 = arith.constant 9.99999974E-6 : f32
    %39 = vector.broadcast %cst_19 : f32 to vector<1x1xf32>
    %40 = arith.addf %36, %39 : vector<1x1xf32>
    %41 = math.rsqrt %40 : vector<1x1xf32>
    %42 = vector.broadcast %41 : vector<1x1xf32> to vector<4x1xf32>
    %43 = arith.mulf %38, %42 : vector<4x1xf32>
    %44 = arith.mulf %43, %4 : vector<4x1xf32>
    %45 = arith.addf %44, %5 : vector<4x1xf32>
    %46 = arith.negf %45 : vector<4x1xf32>
    %47 = math.exp %46 : vector<4x1xf32>
    %cst_20 = arith.constant 1.000000e+00 : f32
    %48 = vector.broadcast %cst_20 : f32 to vector<4x1xf32>
    %49 = arith.addf %48, %47 : vector<4x1xf32>
    %50 = arith.divf %48, %49 : vector<4x1xf32>
    %51 = vector.broadcast %50 : vector<4x1xf32> to vector<4x256xf32>
    %52 = arith.mulf %11, %51 : vector<4x256xf32>
    %53 = arith.index_cast %8 : i32 to index
    %c0_21 = arith.constant 0 : index
    %c0_22 = arith.constant 0 : index
    %54 = vector.load %arg6[%53, %c0_21, %c0_22] : memref<1x4x256xf32, #tpu.memory_space<vmem>>, vector<1x4x256xf32>
    %55 = vector.shape_cast %54 : vector<1x4x256xf32> to vector<4x256xf32>
    %56 = vector.shape_cast %52 : vector<4x256xf32> to vector<1x4x256xf32>
    tpu.vector_store %arg6[%53, %c0_21, %c0_22], %56 {strides = array<i32>} : memref<1x4x256xf32, #tpu.memory_space<vmem>>, vector<1x4x256xf32>,
    %c1_i32_23 = arith.constant 1 : i32
    return
  }
  func.func @transform_0(%arg0: i32) -> (i32, i32, i32) {
    %c0_i32 = arith.constant 0 : i32
    %c0_i32_0 = arith.constant 0 : i32
    %c0_i32_1 = arith.constant 0 : i32
    return %arg0, %c0_i32, %c0_i32_0 : i32, i32, i32
  }
  func.func @transform_1(%arg0: i32) -> (i32, i32) {
    %c0_i32 = arith.constant 0 : i32
    %c0_i32_0 = arith.constant 0 : i32
    %c0_i32_1 = arith.constant 0 : i32
    return %c0_i32, %c0_i32_0 : i32, i32
  }
  func.func @transform_2(%arg0: i32) -> (i32, i32) {
    %c0_i32 = arith.constant 0 : i32
    %c0_i32_0 = arith.constant 0 : i32
    %c0_i32_1 = arith.constant 0 : i32
    return %c0_i32, %c0_i32_0 : i32, i32
  }
  func.func @transform_3(%arg0: i32) -> (i32, i32) {
    %c0_i32 = arith.constant 0 : i32
    %c0_i32_0 = arith.constant 0 : i32
    %c0_i32_1 = arith.constant 0 : i32
    return %c0_i32, %c0_i32_0 : i32, i32
  }
  func.func @transform_4(%arg0: i32) -> (i32, i32) {
    %c0_i32 = arith.constant 0 : i32
    %c0_i32_0 = arith.constant 0 : i32
    %c0_i32_1 = arith.constant 0 : i32
    return %c0_i32, %c0_i32_0 : i32, i32
  }
  func.func @transform_5(%arg0: i32) -> (i32, i32, i32) {
    %c0_i32 = arith.constant 0 : i32
    %c0_i32_0 = arith.constant 0 : i32
    %c0_i32_1 = arith.constant 0 : i32
    return %arg0, %c0_i32, %c0_i32_0 : i32, i32, i32
  }
}

</mosaic_0001>

<llo_original>
// kernel: tpu_custom_call.1
$region0: #{tpu_custom_call.1}
  #allocation0 [shape = 'u32[]', space=smem, size = 0x4, offset = 0x4, fixed_abs, tag = 'smem constant byte address 0x4 - core index']
  #allocation1 [shape = 'u32[144,128]{1,0:T(1,128)}', space=vmem, size = 0x12000, scoped, tag = 'internal scratch']
  %s0 = inlined_call_operand.hbm [shape: f32[2,4,256], index: 0, kind: input, shape index: {}]
  %s1 = inlined_call_operand.vmem [shape: f32[2,4], index: 1, kind: input, shape index: {}]
  %s2 = inlined_call_operand.vmem [shape: f32[1,4], index: 2, kind: input, shape index: {}]
  %s3 = inlined_call_operand.vmem [shape: f32[4,2], index: 3, kind: input, shape index: {}]
  %s4 = inlined_call_operand.vmem [shape: f32[4,3], index: 4, kind: input, shape index: {}]
  %s5 = inlined_call_operand.hbm [shape: f32[2,4,256], index: 5, kind: output, shape index: {}]
  %s6 = sld [smem:[#allocation0]]
  $region57: #{tpu_custom_call.1} parent=0
    _
  %s8 = ssub.s32 1, %s6
  %s9 = scalar_select 0, %s8, %s6
  $region1: #{tpu_custom_call.1} parent=0
    #allocation2 [shape = 'u8[8192]{0}', space=vmem, size = 0x2000, scoped, tag = 'input window, operand 0']
    #allocation3 [shape = 's32[2]{0}', space=sflag, size = 0x8, scoped, tag = 'scoped memory for tpu_custom_call.1']
    #allocation4 [shape = 's32[2]{0}', space=sflag, size = 0x8, scoped, tag = 'scoped memory for tpu_custom_call.1']
    #allocation5 [shape = 'u8[8192]{0}', space=vmem, size = 0x2000, scoped, tag = 'output window, operand 0']
    %10 = vsyncpa [#allocation3], 0
    %s11 = scalar_lea.sflag [#allocation3], 1
    %12 = vsyncpa %s11, 0
    %13 = vsyncpa [#allocation4], 0
    %s14 = scalar_lea.sflag [#allocation4], 1
    %15 = vsyncpa %s14, 0
    loop: start=0, step=1, limit=4
    $region2: #{tpu_custom_call.1} parent=1 // loop_pre_header
      _
    $region3: #{tpu_custom_call.1} parent=1 // loop_header
      %s17 = sphi 0, %s21
      %p18 = scmp.ge.s32.totalorder %s17, 4
      %s27 = sphi 0, %s29
      %s30 = sphi 0, %s27
      %s31 = sphi 0, %s30
      %s47 = sphi 0, %s31
      %s51 = sphi 0, %s51
      %s53 = sphi 0, %s51
      %s54 = sphi 0, %s53
      %s68 = sphi 0, %s54
      %s72 = sphi 0, %s72
      %s74 = sphi 0, %s72
      %s75 = sphi 0, %s74
      %s89 = sphi 0, %s75
      %s93 = sphi 0, %s93
      %s95 = sphi 0, %s93
      %s96 = sphi 0, %s95
      %s110 = sphi 0, %s96
      %s114 = sphi 0, %s114
      %s116 = sphi 0, %s114
      %s117 = sphi 0, %s116
      %s131 = sphi 0, %s117
      %s137 = sphi 0, %s139
      %s140 = sphi 0, %s137
      %s141 = sphi 0, %s140
      %s157 = sphi 0, %s141
    $region4: #{tpu_custom_call.1} parent=1 // loop_header_branch
      %20 = sbr.rel (%p18) target = $region8
    $region5: #{tpu_custom_call.1} parent=1 // loop_body
      %s22 = ssub.s32 %s17, 1
      %s23 = ssub.s32 %s17, 2
      %s24 = sadd.s32 %s17, 1
      %s25 = ssub.s32 %s17, %s24
      %p26 = scmp.eq.s32.totalorder %s25, 0
      %s28 = sadd.s32 %s27, 1
      %s29 = scalar_select %p26, %s27, %s28
      %p32 = pneg %p26
      %p33 = scmp.eq.s32.totalorder %s17, 1
      %p34 = por %p32, %p33
      %p35 = scmp.ne.s32.totalorder %s27, %s30
      %p36 = scmp.eq.s32.totalorder %s17, 0
      %p37 = por %p35, %p36
      %p38 = scmp.ne.s32.totalorder %s27, %s30
      %p39 = scmp.eq.s32.totalorder %s22, 1
      %p40 = por %p38, %p39
      %p41 = scmp.ne.s32.totalorder %s30, %s31
      %p42 = scmp.eq.s32.totalorder %s22, 0
      %p43 = por %p41, %p42
      %p44 = scmp.ne.s32.totalorder %s30, %s31
      %p45 = scmp.eq.s32.totalorder %s23, 1
      %p46 = por %p44, %p45
      %p48 = scmp.ne.s32.totalorder %s31, %s47
      %p49 = scmp.eq.s32.totalorder %s23, 0
      %p50 = por %p48, %p49
      %s52 = sadd.s32 %s51, 1
      %p55 = scmp.eq.s32.totalorder %s17, 1
      %p56 = scmp.ne.s32.totalorder %s51, %s53
      %p57 = scmp.eq.s32.totalorder %s17, 0
      %p58 = por %p56, %p57
      %p59 = scmp.ne.s32.totalorder %s51, %s53
      %p60 = scmp.eq.s32.totalorder %s22, 1
      %p61 = por %p59, %p60
      %p62 = scmp.ne.s32.totalorder %s53, %s54
      %p63 = scmp.eq.s32.totalorder %s22, 0
      %p64 = por %p62, %p63
      %p65 = scmp.ne.s32.totalorder %s53, %s54
      %p66 = scmp.eq.s32.totalorder %s23, 1
      %p67 = por %p65, %p66
      %p69 = scmp.ne.s32.totalorder %s54, %s68
      %p70 = scmp.eq.s32.totalorder %s23, 0
      %p71 = por %p69, %p70
      %s73 = sadd.s32 %s72, 1
      %p76 = scmp.eq.s32.totalorder %s17, 1
      %p77 = scmp.ne.s32.totalorder %s72, %s74
      %p78 = scmp.eq.s32.totalorder %s17, 0
      %p79 = por %p77, %p78
      %p80 = scmp.ne.s32.totalorder %s72, %s74
      %p81 = scmp.eq.s32.totalorder %s22, 1
      %p82 = por %p80, %p81
      %p83 = scmp.ne.s32.totalorder %s74, %s75
      %p84 = scmp.eq.s32.totalorder %s22, 0
      %p85 = por %p83, %p84
      %p86 = scmp.ne.s32.totalorder %s74, %s75
      %p87 = scmp.eq.s32.totalorder %s23, 1
      %p88 = por %p86, %p87
      %p90 = scmp.ne.s32.totalorder %s75, %s89
      %p91 = scmp.eq.s32.totalorder %s23, 0
      %p92 = por %p90, %p91
      %s94 = sadd.s32 %s93, 1
      %p97 = scmp.eq.s32.totalorder %s17, 1
      %p98 = scmp.ne.s32.totalorder %s93, %s95
      %p99 = scmp.eq.s32.totalorder %s17, 0
      %p100 = por %p98, %p99
      %p101 = scmp.ne.s32.totalorder %s93, %s95
      %p102 = scmp.eq.s32.totalorder %s22, 1
      %p103 = por %p101, %p102
      %p104 = scmp.ne.s32.totalorder %s95, %s96
      %p105 = scmp.eq.s32.totalorder %s22, 0
      %p106 = por %p104, %p105
      %p107 = scmp.ne.s32.totalorder %s95, %s96
      %p108 = scmp.eq.s32.totalorder %s23, 1
      %p109 = por %p107, %p108
      %p111 = scmp.ne.s32.totalorder %s96, %s110
      %p112 = scmp.eq.s32.totalorder %s23, 0
      %p113 = por %p111, %p112
      %s115 = sadd.s32 %s114, 1
      %p118 = scmp.eq.s32.totalorder %s17, 1
      %p119 = scmp.ne.s32.totalorder %s114, %s116
      %p120 = scmp.eq.s32.totalorder %s17, 0
      %p121 = por %p119, %p120
      %p122 = scmp.ne.s32.totalorder %s114, %s116
      %p123 = scmp.eq.s32.totalorder %s22, 1
      %p124 = por %p122, %p123
      %p125 = scmp.ne.s32.totalorder %s116, %s117
      %p126 = scmp.eq.s32.totalorder %s22, 0
      %p127 = por %p125, %p126
      %p128 = scmp.ne.s32.totalorder %s116, %s117
      %p129 = scmp.eq.s32.totalorder %s23, 1
      %p130 = por %p128, %p129
      %p132 = scmp.ne.s32.totalorder %s117, %s131
      %p133 = scmp.eq.s32.totalorder %s23, 0
      %p134 = por %p132, %p133
      %s135 = ssub.s32 %s17, %s24
      %p136 = scmp.eq.s32.totalorder %s135, 0
      %s138 = sadd.s32 %s137, 1
      %s139 = scalar_select %p136, %s137, %s138
      %p142 = pneg %p136
      %p143 = scmp.eq.s32.totalorder %s17, 1
      %p144 = por %p142, %p143
      %p145 = scmp.ne.s32.totalorder %s137, %s140
      %p146 = scmp.eq.s32.totalorder %s17, 0
      %p147 = por %p145, %p146
      %p148 = scmp.ne.s32.totalorder %s137, %s140
      %p149 = scmp.eq.s32.totalorder %s22, 1
      %p150 = por %p148, %p149
      %p151 = scmp.ne.s32.totalorder %s140, %s141
      %p152 = scmp.eq.s32.totalorder %s22, 0
      %p153 = por %p151, %p152
      %p154 = scmp.ne.s32.totalorder %s140, %s141
      %p155 = scmp.eq.s32.totalorder %s23, 1
      %p156 = por %p154, %p155
      %p158 = scmp.ne.s32.totalorder %s141, %s157
      %p159 = scmp.eq.s32.totalorder %s23, 0
      %p160 = por %p158, %p159
      %p161 = scmp.le.s32.totalorder 1, %s17
      %p162 = scmp.lt.s32.totalorder %s17, 3
      %p163 = pnand %p161, %p162
      %p164 = pneg %p163
      // Predicated region
      $region9: #{tpu_custom_call.1} parent=5 // pred_check
        _
      $region10: #{tpu_custom_call.1} parent=5 // pred_check_branch
        %166 = sbr.rel (%p163) target = $region12
      $region11: #{tpu_custom_call.1} parent=5 // pred_region
        %s167 = ssub.s32 %s17, 1
        // Predicated region
        $region13: #{tpu_custom_call.1} parent=11 // pred_check
          %p168 = pneg %p64
        $region14: #{tpu_custom_call.1} parent=11 // pred_check_branch
          %170 = sbr.rel (%p168) target = $region16
        $region15: #{tpu_custom_call.1} parent=11 // pred_region
          _
        $region16: #{tpu_custom_call.1} parent=11 // pred_fallthru
          _
        // Predicated region
        $region17: #{tpu_custom_call.1} parent=11 // pred_check
          %p171 = pneg %p85
        $region18: #{tpu_custom_call.1} parent=11 // pred_check_branch
          %173 = sbr.rel (%p171) target = $region20
        $region19: #{tpu_custom_call.1} parent=11 // pred_region
          _
        $region20: #{tpu_custom_call.1} parent=11 // pred_fallthru
          _
        // Predicated region
        $region21: #{tpu_custom_call.1} parent=11 // pred_check
          %p174 = pneg %p106
        $region22: #{tpu_custom_call.1} parent=11 // pred_check_branch
          %176 = sbr.rel (%p174) target = $region24
        $region23: #{tpu_custom_call.1} parent=11 // pred_region
          _
        $region24: #{tpu_custom_call.1} parent=11 // pred_fallthru
          _
        // Predicated region
        $region25: #{tpu_custom_call.1} parent=11 // pred_check
          %p177 = pneg %p127
        $region26: #{tpu_custom_call.1} parent=11 // pred_check_branch
          %179 = sbr.rel (%p177) target = $region28
        $region27: #{tpu_custom_call.1} parent=11 // pred_region
          _
        $region28: #{tpu_custom_call.1} parent=11 // pred_fallthru
          _
      $region12: #{tpu_custom_call.1} parent=5 // pred_fallthru
        _
      %p180 = scmp.lt.s32.totalorder %s17, 2
      // Predicated region
      $region29: #{tpu_custom_call.1} parent=5 // pred_check
        %p181 = pneg %p180
      $region30: #{tpu_custom_call.1} parent=5 // pred_check_branch
        %183 = sbr.rel (%p181) target = $region32
      $region31: #{tpu_custom_call.1} parent=5 // pred_region
        // Predicated region
        $region33: #{tpu_custom_call.1} parent=31 // pred_check
          %p184 = pneg %p37
        $region34: #{tpu_custom_call.1} parent=31 // pred_check_branch
          %186 = sbr.rel (%p184) target = $region36
        $region35: #{tpu_custom_call.1} parent=31 // pred_region
          %s187 = sand.u32 %s27, 1
          %s188 = scalar_lea.sflag [#allocation3], %s187
          %s189 = sand.u32 %s27, 1
          %s190 = smul.addr %s189, 8
          %s191 = scalar_lea.vmem [#allocation2], %s190
          %s193 = ssub.s32 128, 128
          %194 = vsyncadd %s188, %s193
          %s195 = smul.addr %s17, 2
          %s196 = smul.addr %s195, 64
          %s197 = scalar_lea.hbm %s0, %s196
          %s199 = sshll.u32 %s191, 4
          %s200 = int_to_ptr.vmem [resolvable:$true] %s199
          %202 = dma.hbm_to_vmem [thread:$0]  %s197, 128, %s200, %s188
        $region36: #{tpu_custom_call.1} parent=31 // pred_fallthru
          _
      $region32: #{tpu_custom_call.1} parent=5 // pred_fallthru
        _
      %p203 = scmp.le.s32.totalorder 1, %s17
      %p204 = scmp.lt.s32.totalorder %s17, 3
      %p205 = pnand %p203, %p204
      %p206 = pneg %p205
      // Predicated region
      $region37: #{tpu_custom_call.1} parent=5 // pred_check
        _
      $region38: #{tpu_custom_call.1} parent=5 // pred_check_branch
        %208 = sbr.rel (%p205) target = $region40
      $region39: #{tpu_custom_call.1} parent=5 // pred_region
        %s209 = ssub.s32 %s17, 1
        %s210 = sand.u32 %s30, 1
        %s211 = scalar_lea.sflag [#allocation3], %s210
        %s212 = sand.u32 %s30, 1
        %s213 = smul.addr %s212, 8
        %s214 = scalar_lea.vmem [#allocation2], %s213
        // Predicated region
        $region41: #{tpu_custom_call.1} parent=39 // pred_check
          %p215 = pneg %p43
        $region42: #{tpu_custom_call.1} parent=39 // pred_check_branch
          %217 = sbr.rel (%p215) target = $region44
        $region43: #{tpu_custom_call.1} parent=39 // pred_region
          %218 = dma.done %s211, 128
        $region44: #{tpu_custom_call.1} parent=39 // pred_fallthru
          _
        %s219 = sand.u32 %s30, 1
        %s220 = scalar_lea.sflag [#allocation3], %s219
        %s221 = sand.u32 %s30, 1
        %s222 = smul.addr %s221, 8
        %s223 = scalar_lea.vmem [#allocation2], %s222
        %p224 = pneg %p43
        %p225 = pneg %p40
        %p226 = pneg %p64
        %p227 = pneg %p61
        %p228 = pneg %p85
        %p229 = pneg %p82
        %p230 = pneg %p106
        %p231 = pneg %p103
        %p232 = pneg %p127
        %p233 = pneg %p124
        %p234 = pneg %p153
        %p235 = pneg %p150
        %s236 = sand.u32 %s140, 1
        %s237 = scalar_lea.sflag [#allocation4], %s236
        %s238 = sand.u32 %s140, 1
        %s239 = smul.addr %s238, 8
        %s240 = scalar_lea.vmem [#allocation5], %s239
        %v241 = vld [vmem:[%s1] sm:$0x3]
        %v242 = vld [vmem:[%s3] sm:$0xf]
        %v243 = vld [vmem:[%s4] sm:$0xf]
        %v244 = vld [vmem:[%s2] sm:$0x1]
        %v245 = vld [vmem:[%s214] sm:$0xff]
        %v247 = vcombine.high %v245, %v245
        %vm248 = vcmask 31744
        %v250 = vsel %vm248, %v244, 0
        %vm252 = vcmask 1043456
        %v253 = vsel %vm252, %v245, 0
        %v255 = vsel %vm252, %v247, 0
        %257 = vmatprep.subr.mxu0 %v255
        %258 = vmatpush1.msra.mxu0 %v253
        %259 = vmatprep.subr.mxu0 0.0
        %260 = vmatpush1.msra.mxu0 0.0
        %261 = vmatprep.subr.mxu0 0.0
        %262 = vmatpush1.msra.mxu0 0.0
        %263 = vmatprep.subr.mxu0 0.0
        %264 = vmatpush1.msra.mxu0 0.0
        %265 = vmatprep.subr.mxu0 0.0
        %266 = vmatpush1.msra.mxu0 0.0
        %267 = vmatprep.subr.mxu0 0.0
        %268 = vmatpush1.msra.mxu0 0.0
        %269 = vmatprep.subr.mxu0 0.0
        %270 = vmatpush1.msra.mxu0 0.0
        %271 = vmatprep.subr.mxu0 0.0
        %272 = vmatpush1.msra.mxu0 0.0
        %273 = vmatprep.subr.mxu0 0.0
        %274 = vmatpush1.msra.mxu0 0.0
        %275 = vmatprep.subr.mxu0 0.0
        %276 = vmatpush1.msra.mxu0 0.0
        %277 = vmatprep.subr.mxu0 0.0
        %278 = vmatpush1.msra.mxu0 0.0
        %279 = vmatprep.subr.mxu0 0.0
        %280 = vmatpush1.msra.mxu0 0.0
        %281 = vmatprep.subr.mxu0 0.0
        %282 = vmatpush1.msra.mxu0 0.0
        %283 = vmatprep.subr.mxu0 0.0
        %284 = vmatpush1.msra.mxu0 0.0
        %285 = vmatprep.subr.mxu0 0.0
        %286 = vmatpush1.msra.mxu0 0.0
        %287 = vmatprep.subr.mxu0 0.0
        %288 = vmatpush1.msra.mxu0 0.0
        %289 = vmatprep.subr.mxu0 0.0
        %290 = vmatpush1.msra.mxu0 0.0
        %291 = vmatprep.subr.mxu0 0.0
        %292 = vmatpush1.msra.mxu0 0.0
        %293 = vmatprep.subr.mxu0 0.0
        %294 = vmatpush1.msra.mxu0 0.0
        %295 = vmatprep.subr.mxu0 0.0
        %296 = vmatpush1.msra.mxu0 0.0
        %297 = vmatprep.subr.mxu0 0.0
        %298 = vmatpush1.msra.mxu0 0.0
        %299 = vmatprep.subr.mxu0 0.0
        %300 = vmatpush1.msra.mxu0 0.0
        %301 = vmatprep.subr.mxu0 0.0
        %302 = vmatpush1.msra.mxu0 0.0
        %303 = vmatprep.subr.mxu0 0.0
        %304 = vmatpush1.msra.mxu0 0.0
        %305 = vmatprep.subr.mxu0 0.0
        %306 = vmatpush1.msra.mxu0 0.0
        %307 = vmatprep.subr.mxu0 0.0
        %308 = vmatpush1.msra.mxu0 0.0
        %309 = vmatprep.subr.mxu0 0.0
        %310 = vmatpush1.msra.mxu0 0.0
        %311 = vmatprep.subr.mxu0 0.0
        %312 = vmatpush1.msra.mxu0 0.0
        %313 = vmatprep.subr.mxu0 0.0
        %314 = vmatpush1.msra.mxu0 0.0
        %315 = vmatprep.subr.mxu0 0.0
        %316 = vmatpush1.msra.mxu0 0.0
        %317 = vmatprep.subr.mxu0 0.0
        %318 = vmatpush1.msra.mxu0 0.0
        %319 = vmatprep.subr.mxu0 0.0
        %320 = vmatpush1.msra.mxu0 0.0
        %321 = vmatprep.mubr.f32.mxu0 0.0
        %322 = vmatmul.mubr.f32.gmra.mrb[0].mxu0 %v250
        %v323 = vpop.f32.mrb[0].mxu0
        %v324 = vadd.f32 0.0, %v323
        %v325 = vpop.f32.mrb[0].mxu0
        %v326 = vadd.f32 0.0, %v325
        %327 = vdwg.mxu0
        %vm328 = vcmask 1040384
        %v329 = vsel %vm328, %v324, -inf
        %v330 = vsel %vm328, %v326, -inf
        %v331 = vmax.f32 %v329, %v330
        %332 = vmax.xlane.f32.xlu0 %v331
        %v333 = vpop.xlane.xlu0 %332
        %v334 = vsub.f32 %v324, %v333
        %v335 = vsub.f32 %v326, %v333
        %v336 = vmul.f32 %v334, 1.442695
        %v337 = vpow.pop %v336
        %v338 = vmul.f32 %v335, 1.442695
        %v339 = vpow.pop %v338
        %v340 = vsel %vm328, %v337, 0.0
        %v341 = vsel %vm328, %v339, 0.0
        %v342 = vadd.f32 %v340, %v341
        %343 = vadd.xlane.f32.xlu0 %v342
        %v344 = vpop.xlane.xlu0 %343
        %v345 = vlaneseq
        %v346 = vshrl.u32 %v345, 7
        %v347 = vsub.s32 0, %v346
        %v348 = vrot.slane %v337, %v347
        %v349 = vlaneseq
        %v350 = vshrl.u32 %v349, 7
        %v351 = vsub.s32 0, %v350
        %v352 = vrot.slane %v339, %v351
        %v355 = vcombine.low %v348, %v352
        %v357 = vmul.f32 %v245, %v355
        %v359 = vcombine.high %v357, %v357
        %v361 = vsel %vm252, %v357, 0.0
        %v362 = vsel %vm252, %v359, 0.0
        %v363 = vadd.f32 %v361, %v362
        %364 = vadd.xlane.f32.xlu0 %v363
        %v365 = vpop.xlane.xlu0 %364
        %v366 = vlaneseq
        %v367 = vshrl.u32 %v366, 7
        %v368 = vsub.s32 0, %v367
        %v369 = vrot.slane %v344, %v368
        %v370 = vrcp.pop %v369
        %v371 = vmul.f32 %v365, %v370
        %v373 = vsel %vm248, %v241, 0
        %v376 = vsel %vm252, %v371, 0
        %378 = vmatprep.subr.mxu0 0.0
        %379 = vmatpush1.msra.mxu0 %v376
        %380 = vmatprep.subr.mxu0 0.0
        %381 = vmatpush1.msra.mxu0 0.0
        %382 = vmatprep.subr.mxu0 0.0
        %383 = vmatpush1.msra.mxu0 0.0
        %384 = vmatprep.subr.mxu0 0.0
        %385 = vmatpush1.msra.mxu0 0.0
        %386 = vmatprep.subr.mxu0 0.0
        %387 = vmatpush1.msra.mxu0 0.0
        %388 = vmatprep.subr.mxu0 0.0
        %389 = vmatpush1.msra.mxu0 0.0
        %390 = vmatprep.subr.mxu0 0.0
        %391 = vmatpush1.msra.mxu0 0.0
        %392 = vmatprep.subr.mxu0 0.0
        %393 = vmatpush1.msra.mxu0 0.0
        %394 = vmatprep.subr.mxu0 0.0
        %395 = vmatpush1.msra.mxu0 0.0
        %396 = vmatprep.subr.mxu0 0.0
        %397 = vmatpush1.msra.mxu0 0.0
        %398 = vmatprep.subr.mxu0 0.0
        %399 = vmatpush1.msra.mxu0 0.0
        %400 = vmatprep.subr.mxu0 0.0
        %401 = vmatpush1.msra.mxu0 0.0
        %402 = vmatprep.subr.mxu0 0.0
        %403 = vmatpush1.msra.mxu0 0.0
        %404 = vmatprep.subr.mxu0 0.0
        %405 = vmatpush1.msra.mxu0 0.0
        %406 = vmatprep.subr.mxu0 0.0
        %407 = vmatpush1.msra.mxu0 0.0
        %408 = vmatprep.subr.mxu0 0.0
        %409 = vmatpush1.msra.mxu0 0.0
        %410 = vmatprep.subr.mxu0 0.0
        %411 = vmatpush1.msra.mxu0 0.0
        %412 = vmatprep.subr.mxu0 0.0
        %413 = vmatpush1.msra.mxu0 0.0
        %414 = vmatprep.subr.mxu0 0.0
        %415 = vmatpush1.msra.mxu0 0.0
        %416 = vmatprep.subr.mxu0 0.0
        %417 = vmatpush1.msra.mxu0 0.0
        %418 = vmatprep.subr.mxu0 0.0
        %419 = vmatpush1.msra.mxu0 0.0
        %420 = vmatprep.subr.mxu0 0.0
        %421 = vmatpush1.msra.mxu0 0.0
        %422 = vmatprep.subr.mxu0 0.0
        %423 = vmatpush1.msra.mxu0 0.0
        %424 = vmatprep.subr.mxu0 0.0
        %425 = vmatpush1.msra.mxu0 0.0
        %426 = vmatprep.subr.mxu0 0.0
        %427 = vmatpush1.msra.mxu0 0.0
        %428 = vmatprep.subr.mxu0 0.0
        %429 = vmatpush1.msra.mxu0 0.0
        %430 = vmatprep.subr.mxu0 0.0
        %431 = vmatpush1.msra.mxu0 0.0
        %432 = vmatprep.subr.mxu0 0.0
        %433 = vmatpush1.msra.mxu0 0.0
        %434 = vmatprep.subr.mxu0 0.0
        %435 = vmatpush1.msra.mxu0 0.0
        %436 = vmatprep.subr.mxu0 0.0
        %437 = vmatpush1.msra.mxu0 0.0
        %438 = vmatprep.subr.mxu0 0.0
        %439 = vmatpush1.msra.mxu0 0.0
        %440 = vmatprep.subr.mxu0 0.0
        %441 = vmatpush1.msra.mxu0 0.0
        %442 = vmatprep.mubr.f32.mxu0 0.0
        %443 = vmatmul.mubr.f32.gmra.mrb[0].mxu0 %v373
        %v444 = vpop.f32.mrb[0].mxu0
        %v445 = vadd.f32 %v243, %v444
        %v446 = vpop.f32.mrb[0].mxu0
        %447 = vdwg.mxu0
        %vm448 = vcmask 15360
        %v450 = vsel %vm448, %v242, 0
        %vm452 = vcmask 1041408
        %v454 = vsel %vm452, %v445, 0
        %456 = vmatprep.subr.mxu0 0.0
        %457 = vmatpush1.msra.mxu0 %v454
        %458 = vmatprep.subr.mxu0 0.0
        %459 = vmatpush1.msra.mxu0 0.0
        %460 = vmatprep.subr.mxu0 0.0
        %461 = vmatpush1.msra.mxu0 0.0
        %462 = vmatprep.subr.mxu0 0.0
        %463 = vmatpush1.msra.mxu0 0.0
        %464 = vmatprep.subr.mxu0 0.0
        %465 = vmatpush1.msra.mxu0 0.0
        %466 = vmatprep.subr.mxu0 0.0
        %467 = vmatpush1.msra.mxu0 0.0
        %468 = vmatprep.subr.mxu0 0.0
        %469 = vmatpush1.msra.mxu0 0.0
        %470 = vmatprep.subr.mxu0 0.0
        %471 = vmatpush1.msra.mxu0 0.0
        %472 = vmatprep.subr.mxu0 0.0
        %473 = vmatpush1.msra.mxu0 0.0
        %474 = vmatprep.subr.mxu0 0.0
        %475 = vmatpush1.msra.mxu0 0.0
        %476 = vmatprep.subr.mxu0 0.0
        %477 = vmatpush1.msra.mxu0 0.0
        %478 = vmatprep.subr.mxu0 0.0
        %479 = vmatpush1.msra.mxu0 0.0
        %480 = vmatprep.subr.mxu0 0.0
        %481 = vmatpush1.msra.mxu0 0.0
        %482 = vmatprep.subr.mxu0 0.0
        %483 = vmatpush1.msra.mxu0 0.0
        %484 = vmatprep.subr.mxu0 0.0
        %485 = vmatpush1.msra.mxu0 0.0
        %486 = vmatprep.subr.mxu0 0.0
        %487 = vmatpush1.msra.mxu0 0.0
        %488 = vmatprep.subr.mxu0 0.0
        %489 = vmatpush1.msra.mxu0 0.0
        %490 = vmatprep.subr.mxu0 0.0
        %491 = vmatpush1.msra.mxu0 0.0
        %492 = vmatprep.subr.mxu0 0.0
        %493 = vmatpush1.msra.mxu0 0.0
        %494 = vmatprep.subr.mxu0 0.0
        %495 = vmatpush1.msra.mxu0 0.0
        %496 = vmatprep.subr.mxu0 0.0
        %497 = vmatpush1.msra.mxu0 0.0
        %498 = vmatprep.subr.mxu0 0.0
        %499 = vmatpush1.msra.mxu0 0.0
        %500 = vmatprep.subr.mxu0 0.0
        %501 = vmatpush1.msra.mxu0 0.0
        %502 = vmatprep.subr.mxu0 0.0
        %503 = vmatpush1.msra.mxu0 0.0
        %504 = vmatprep.subr.mxu0 0.0
        %505 = vmatpush1.msra.mxu0 0.0
        %506 = vmatprep.subr.mxu0 0.0
        %507 = vmatpush1.msra.mxu0 0.0
        %508 = vmatprep.subr.mxu0 0.0
        %509 = vmatpush1.msra.mxu0 0.0
        %510 = vmatprep.subr.mxu0 0.0
        %511 = vmatpush1.msra.mxu0 0.0
        %512 = vmatprep.subr.mxu0 0.0
        %513 = vmatpush1.msra.mxu0 0.0
        %514 = vmatprep.subr.mxu0 0.0
        %515 = vmatpush1.msra.mxu0 0.0
        %516 = vmatprep.subr.mxu0 0.0
        %517 = vmatpush1.msra.mxu0 0.0
        %518 = vmatprep.subr.mxu0 0.0
        %519 = vmatpush1.msra.mxu0 0.0
        %520 = vmatprep.mubr.f32.mxu0 0.0
        %521 = vmatmul.mubr.f32.gmra.mrb[0].mxu0 %v450
        %v522 = vpop.f32.mrb[0].mxu0
        %v523 = vadd.f32 0.0, %v522
        %v524 = vpop.f32.mrb[0].mxu0
        %525 = vdwg.mxu0
        %vm526 = vcmask 3072
        %v527 = vsel %vm526, %v523, 0.0
        %v528 = vrot.slane %v527, 4
        %v529 = vadd.f32 %v527, %v528
        %v530 = vrot.slane %v529, 2
        %v531 = vadd.f32 %v529, %v530
        %v532 = vrot.slane %v531, 1
        %v533 = vadd.f32 %v531, %v532
        %v534 = vrcp.pop 4.0
        %v535 = vmul.f32 %v533, %v534
        %v536 = vsub.f32 %v523, %v535
        %v537 = vmul.f32 %v536, %v536
        %v538 = vsel %vm526, %v537, 0.0
        %v539 = vrot.slane %v538, 4
        %v540 = vadd.f32 %v538, %v539
        %v541 = vrot.slane %v540, 2
        %v542 = vadd.f32 %v540, %v541
        %v543 = vrot.slane %v542, 1
        %v544 = vadd.f32 %v542, %v543
        %v545 = vmul.f32 %v544, %v534
        %v546 = vadd.f32 %v545, 1e-05
        %v547 = vrsqrt.pop %v546
        %v548 = vmul.f32 %v536, %v547
        %550 = vrot.lane.b32.xlu0 %v243, 127
        %v551 = vpop.permute.xlu0 %550
        %v553 = vmul.f32 %v548, %v551
        %554 = vrot.lane.b32.xlu0 %v243, 126
        %v555 = vpop.permute.xlu0 %554
        %v557 = vadd.f32 %v553, %v555
        %v558 = vxor.u32 %v557, 2147483648
        %v559 = vmul.f32 %v558, 1.442695
        %v560 = vpow.pop %v559
        %v561 = vadd.f32 %v560, 1.0
        %v562 = vrcp.pop %v561
        %v563 = vmul.f32 1.0, %v562
        %565 = vset.pattern.permute.xlu0 0
        %566 = vperm.xlu0 %565, %v563
        %v567 = vpop.permute.xlu0 %566
        %v569 = vunpack.c.l.s4 839922192
        %v570 = vunpack.c.0.s8 %v569
        %v571 = vlaneseq
        %v572 = vshrl.u32 %v571, 7
        %v573 = vsub.s32 %v570, %v572
        %v574 = vrot.slane %v567, %v573
        %v576 = vmul.f32 %v245, %v574
        %577 = vst [vmem:[%s240] sm:$0xff] %v576
        %s578 = sand.u32 %s140, 1
        %s579 = scalar_lea.sflag [#allocation4], %s578
        %s580 = sand.u32 %s140, 1
        %s581 = smul.addr %s580, 8
        %s582 = scalar_lea.vmem [#allocation5], %s581
        // Predicated region
        $region45: #{tpu_custom_call.1} parent=39 // pred_check
          %p583 = pneg %p150
        $region46: #{tpu_custom_call.1} parent=39 // pred_check_branch
          %585 = sbr.rel (%p583) target = $region48
        $region47: #{tpu_custom_call.1} parent=39 // pred_region
          %s587 = ssub.s32 128, 128
          %588 = vsyncadd %s579, %s587
          %s589 = smul.addr %s22, 2
          %s590 = smul.addr %s589, 64
          %s591 = scalar_lea.hbm %s5, %s590
          %s593 = sshll.u32 %s582, 4
          %s594 = int_to_ptr.vmem [resolvable:$true] %s593
          %596 = dma.vmem_to_hbm [thread:$0]  %s594, 128, %s591, %s579
        $region48: #{tpu_custom_call.1} parent=39 // pred_fallthru
          _
      $region40: #{tpu_custom_call.1} parent=5 // pred_fallthru
        _
      %p597 = scmp.le.s32.totalorder 2, %s17
      // Predicated region
      $region49: #{tpu_custom_call.1} parent=5 // pred_check
        %p598 = pneg %p597
      $region50: #{tpu_custom_call.1} parent=5 // pred_check_branch
        %600 = sbr.rel (%p598) target = $region52
      $region51: #{tpu_custom_call.1} parent=5 // pred_region
        %s601 = ssub.s32 %s17, 2
        // Predicated region
        $region53: #{tpu_custom_call.1} parent=51 // pred_check
          %p602 = pneg %p156
        $region54: #{tpu_custom_call.1} parent=51 // pred_check_branch
          %604 = sbr.rel (%p602) target = $region56
        $region55: #{tpu_custom_call.1} parent=51 // pred_region
          %s605 = sand.u32 %s141, 1
          %s606 = scalar_lea.sflag [#allocation4], %s605
          %s607 = sand.u32 %s141, 1
          %s608 = smul.addr %s607, 8
          %s609 = scalar_lea.vmem [#allocation5], %s608
          %610 = dma.done %s606, 128
        $region56: #{tpu_custom_call.1} parent=51 // pred_fallthru
          _
      $region52: #{tpu_custom_call.1} parent=5 // pred_fallthru
        _
    $region6: #{tpu_custom_call.1} parent=1 // loop_footer
      %s21 = sadd.s32 1, %s17
    $region7: #{tpu_custom_call.1} parent=1 // loop_footer_branch
      %16 = sbr.rel target = $region3
    $region8: #{tpu_custom_call.1} parent=1 // loop_exit
      _
    %611 = vsyncpa [#allocation3], 1
    %s612 = scalar_lea.sflag [#allocation3], 1
    %613 = vsyncpa %s612, 1
    %614 = vsyncpa [#allocation4], 1
    %s615 = scalar_lea.sflag [#allocation4], 1
    %616 = vsyncpa %s615, 1

</llo_original>
